<compile_context>
chip_gen: v7x
topology: tpu7x:2x2x1
jax: 0.10.0
libtpu: 0.0.40
codegen_flags: <defaults>
</compile_context>

<pallas_src>
import functools

import jax
import jax.numpy as jnp
import numpy as np
from jax import lax
from jax.experimental import pallas as pl
from jax.experimental.pallas import tpu as pltpu


# ----------------------------------------------------------------------------
# Hardware sizing helpers.
# ----------------------------------------------------------------------------
def _vmem_limit_bytes():
    try:
        phys = int(pltpu.get_tpu_info().vmem_capacity_bytes)
    except Exception:
        phys = 64 * 1024 * 1024                # conservative default (v7x)
    if phys >= 100 * 1024 * 1024:              # v5e / v6e: 128 MiB physical
        return int(phys * 3 // 4)              # ~96 MiB scoped limit
    return max(phys // 2, 16 * 1024 * 1024)    # v7x: stay conservative


def _repack(M, L):
    """Lane repacking: (M, L) -> (M*L/128, 128) when it is a free reshape."""
    if L < 128 and 128 % L == 0 and (M * L) % 128 == 0:
        return 128 // L, 128, (M * L) // 128   # (lane_groups, Lp, Mp)
    return 1, L, M


def _clip_tile(tm, rows, cap=4096):
    tm = min(int(tm), cap, rows)
    if tm < rows:
        tm = max(8, (tm // 8) * 8)             # sublane-aligned tile
    return max(1, tm)


# ----------------------------------------------------------------------------
# Fused single-pass kernel (slab resident in VMEM; x read from HBM once).
# inputs : x (Mp, Lp), weight (1, L), bias (1, L), running_var (1, L),
#          buffer_x2 (BUF, L), slot one-hot (BUF, 1), use_x2 flag (1, 1),
#          no_clamp flag (1, 1)            -- flags precomputed in XLA from it.
# outputs: y (Mp, Lp), new running_var (1, L), new buffer_x2 (BUF, L)
# ----------------------------------------------------------------------------
def _mabn_fused_kernel(x_ref, w_ref, b_ref, rv_ref, buf_ref, slot_ref,
                       usex2_ref, noclamp_ref, y_ref, rv_out_ref, buf_out_ref,
                       *, eps, momentum, n_rows, L, lane_groups, chunk):
    Mp, Lp = x_ref.shape
    nch = -(-Mp // chunk)

    # ---- pass 1: per-lane sum of x*x (chunked to bound f32 temporaries) ----
    ssum = jnp.zeros((1, Lp), dtype=jnp.float32)
    for i in range(nch):
        r0 = i * chunk
        r1 = min(Mp, r0 + chunk)
        xc = x_ref[r0:r1, :].astype(jnp.float32)
        ssum = ssum + jnp.sum(xc * xc, axis=0, keepdims=True)

    # ---- fold lane replicas back to per-column sums (exact, no MXU) ----
    if lane_groups > 1:
        col_sum = ssum[:, 0:L]
        for a in range(1, lane_groups):
            col_sum = col_sum + ssum[:, a * L:(a + 1) * L]
    else:
        col_sum = ssum
    x2 = col_sum * (1.0 / n_rows)                            # (1, L)

    # ---- MABN statistics + fused per-column scale ----
    buf = buf_ref[...]                                       # (BUF, L) f32
    slot = slot_ref[...]                                     # (BUF, 1) one-hot
    new_buf = slot * x2 + (1.0 - slot) * buf                 # row replacement
    usex2 = usex2_ref[...]                                   # (1, 1) in {0,1}
    var = usex2 * x2 + (1.0 - usex2) * jnp.mean(new_buf, axis=0, keepdims=True)
    rv = rv_ref[...]
    inv_std = lax.rsqrt(var + eps)                           # EUP
    r = jnp.sqrt(var + eps) * lax.rsqrt(rv + eps)
    noclamp = noclamp_ref[...]                               # (1, 1) in {0,1}
    r = noclamp + (1.0 - noclamp) * jnp.clip(r, 0.2, 5.0)
    scale = w_ref[...] * r * inv_std                         # (1, L)
    bias = b_ref[...]
    rv_out_ref[...] = momentum * rv + (1.0 - momentum) * var
    buf_out_ref[...] = new_buf

    # ---- spread scale/bias onto the packed lane layout ----
    if lane_groups > 1:
        scale_p = jnp.concatenate([scale] * lane_groups, axis=1)   # (1, Lp)
        bias_p = jnp.concatenate([bias] * lane_groups, axis=1)
    else:
        scale_p, bias_p = scale, bias

    # ---- pass 2: y = scale * x + bias (x re-read from VMEM, not HBM) ----
    for i in range(nch):
        r0 = i * chunk
        r1 = min(Mp, r0 + chunk)
        xc = x_ref[r0:r1, :].astype(jnp.float32)
        y_ref[r0:r1, :] = (scale_p * xc + bias_p).astype(y_ref.dtype)


# ----------------------------------------------------------------------------
# Streaming kernel 1: per-lane sum of x*x over full row tiles.
# grid = (n_cores, blocks_per_core); the output block (8, Lp) is the
# accumulator (revisited across the "arbitrary" axis, one block per core).
# Only full tiles are visited, so the steady-state loop has no masking.
# ----------------------------------------------------------------------------
def _mabn_sum_kernel(x_ref, psum_ref, *, row_tile):
    t = pl.program_id(1)

    @pl.when(t == 0)
    def _():
        psum_ref[...] = jnp.zeros_like(psum_ref)

    xf = x_ref[...].astype(jnp.float32)
    xx = xf * xf
    lanes = xx.shape[-1]
    if row_tile % 8 == 0:
        # (TM, Lp) -> (TM//8, 8, Lp) is layout-preserving; the axis-0 reduce is
        # pure VALU adds.  The single 8->1 cross-sublane fold happens in XLA.
        psum_ref[...] += jnp.sum(xx.reshape(row_tile // 8, 8, lanes), axis=0)
    else:
        psum_ref[0:1, :] = psum_ref[0:1, :] + jnp.sum(xx, axis=0, keepdims=True)


# ----------------------------------------------------------------------------
# Streaming kernel 2: elementwise apply  y = scale * x + bias.
# ----------------------------------------------------------------------------
def _mabn_apply_kernel(x_ref, scale_ref, bias_ref, y_ref):
    xf = x_ref[...].astype(jnp.float32)
    y_ref[...] = (scale_ref[...] * xf + bias_ref[...]).astype(y_ref.dtype)


def _apply_scale(x2d, scale_p, bias_p, TM, vmem_limit):
    Mp, Lp = x2d.shape
    T = -(-Mp // TM)
    return pl.pallas_call(
        _mabn_apply_kernel,
        out_shape=jax.ShapeDtypeStruct((Mp, Lp), x2d.dtype),
        grid=(T,),
        in_specs=[
            pl.BlockSpec((TM, Lp), lambda t: (t, 0)),       # x row tile
            pl.BlockSpec((1, Lp), lambda t: (0, 0)),        # scale (resident)
            pl.BlockSpec((1, Lp), lambda t: (0, 0)),        # bias (resident)
        ],
        out_specs=pl.BlockSpec((TM, Lp), lambda t: (t, 0)),
        compiler_params=pltpu.CompilerParams(
            dimension_semantics=("parallel",),              # megacore on v7x
            vmem_limit_bytes=vmem_limit),
    )(x2d, scale_p, bias_p)


# ----------------------------------------------------------------------------
# Public wrappers.
# ----------------------------------------------------------------------------
def mabn1d_train_forward(x, weight, bias, running_var, buffer_x2, iters, *,
                         eps=1e-5, momentum=0.98, warmup_iters=100,
                         row_tile=None, force_two_pass=False):
    """Training-mode MABN1d forward.

    x           : (B, C, L); L must equal `channels`
    weight,bias : (L,)
    running_var : (1, L, 1, 1)
    buffer_x2   : (buffer_size, L)
    iters       : python int or int32 device scalar (pre-increment value)

    Returns (y, new_running_var, new_buffer_x2, new_iters).
    """
    B, C, L = x.shape
    BUF = buffer_x2.shape[0]
    M = B * C
    g, Lp, Mp = _repack(M, L)

    x2d = x.reshape(Mp, Lp)                       # big tensor stays in its dtype
    w2d = weight.reshape(1, L).astype(jnp.float32)
    b2d = bias.reshape(1, L).astype(jnp.float32)
    rv2d = running_var.reshape(1, L).astype(jnp.float32)
    buf = buffer_x2.astype(jnp.float32)

    # Increment the iteration counter on device (no host sync, jit-friendly).
    cur = jnp.asarray(iters, dtype=jnp.int32).reshape(()) + 1

    vmem_limit = _vmem_limit_bytes()
    itemsize = x2d.dtype.itemsize

    # -------- fused single-pass path (x read from HBM exactly once) --------
    chunk = max(8, min(1024, ((2 * 1024 * 1024) // max(1, Lp * 4)) // 8 * 8))
    fused_need = (2 * Mp * Lp * itemsize            # x in + y out (resident)
                  + 4 * chunk * Lp * 4              # f32 chunk temporaries
                  + (BUF + 16) * max(L, 128) * 4)   # small per-L params
    if (not force_two_pass) and fused_need <= int(0.7 * vmem_limit):
        slot_onehot = (jnp.arange(BUF, dtype=jnp.int32) == (cur % BUF)
                       ).astype(jnp.float32).reshape(BUF, 1)
        usex2_f = jnp.logical_or(cur <= BUF, cur < warmup_iters
                                 ).astype(jnp.float32).reshape(1, 1)
        noclamp_f = (cur <= max(1000, warmup_iters)
                     ).astype(jnp.float32).reshape(1, 1)
        kernel = functools.partial(
            _mabn_fused_kernel, eps=eps, momentum=momentum, n_rows=M, L=L,
            lane_groups=g, chunk=chunk)
        y2d, new_rv, new_buf = pl.pallas_call(
            kernel,
            out_shape=[
                jax.ShapeDtypeStruct((Mp, Lp), x2d.dtype),          # y
                jax.ShapeDtypeStruct((1, L), jnp.float32),          # running_var
                jax.ShapeDtypeStruct((BUF, L), jnp.float32),        # buffer_x2
            ],
            in_specs=[pl.BlockSpec(memory_space=pltpu.MemorySpace.VMEM)
                      for _ in range(8)],
            out_specs=[pl.BlockSpec(memory_space=pltpu.MemorySpace.VMEM)
                       for _ in range(3)],
            compiler_params=pltpu.CompilerParams(vmem_limit_bytes=vmem_limit),
        )(x2d, w2d, b2d, rv2d, buf, slot_onehot, usex2_f, noclamp_f)
        return (y2d.reshape(B, C, L), new_rv.reshape(1, L, 1, 1), new_buf, cur)

    # -------- streaming two-pass path --------
    budget = int(0.7 * vmem_limit)
    if row_tile is not None:
        TMs = _clip_tile(row_tile, Mp)
        TMa = _clip_tile(row_tile, Mp)
    else:
        # stats pass keeps 2 input buffers resident, apply keeps 2 in + 2 out.
        TMs = _clip_tile(budget // max(1, Lp * (2 * itemsize + 8)), Mp)
        TMa = _clip_tile(budget // max(1, Lp * (4 * itemsize + 8)), Mp)

    # --- pass 1: per-lane sum of x*x (Pallas over full tiles, XLA tail) ---
    covered = 0
    col_sum = None
    full_blocks = Mp // TMs
    if full_blocks >= 1:
        n_cores = 2 if full_blocks >= 4 else 1    # v7x: both TCs share the sum
        bpc = full_blocks // n_cores
        covered = n_cores * bpc * TMs
        psum = pl.pallas_call(
            functools.partial(_mabn_sum_kernel, row_tile=TMs),
            out_shape=jax.ShapeDtypeStruct((n_cores * 8, Lp), jnp.float32),
            grid=(n_cores, bpc),
            in_specs=[pl.BlockSpec((TMs, Lp),
                                   lambda c, t, _b=bpc: (c * _b + t, 0))],
            out_specs=pl.BlockSpec((8, Lp), lambda c, t: (c, 0)),
            compiler_params=pltpu.CompilerParams(
                dimension_semantics=("parallel", "arbitrary"),
                vmem_limit_bytes=vmem_limit),
        )(x2d)
        col_sum = jnp.sum(psum, axis=0, keepdims=True)        # (1, Lp)
    if covered < Mp:
        tail = x2d[covered:, :].astype(jnp.float32)
        tail_sum = jnp.sum(tail * tail, axis=0, keepdims=True)
        col_sum = tail_sum if col_sum is None else col_sum + tail_sum

    # --- tiny per-column finalize math in plain XLA ---
    if g > 1:
        col_sum = col_sum.reshape(g, L).sum(axis=0, keepdims=True)
    x2 = col_sum / jnp.float32(M)
    slot = cur % BUF
    new_buf = buf.at[slot].set(x2[0])
    use_x2 = jnp.logical_or(cur <= BUF, cur < warmup_iters)
    var = jnp.where(use_x2, x2, jnp.mean(new_buf, axis=0, keepdims=True))
    inv_std = lax.rsqrt(var + eps)
    r = jnp.sqrt(var + eps) * lax.rsqrt(rv2d + eps)
    no_clamp = cur <= max(1000, warmup_iters)
    r = jnp.where(no_clamp, jnp.ones_like(r), jnp.clip(r, 0.2, 5.0))
    scale = w2d * r * inv_std
    new_rv = momentum * rv2d + (1.0 - momentum) * var

    scale_p = jnp.tile(scale, (1, g)) if g > 1 else scale
    bias_p = jnp.tile(b2d, (1, g)) if g > 1 else b2d

    # --- pass 2: lane-dense apply ---
    y2d = _apply_scale(x2d, scale_p, bias_p, TMa, vmem_limit)
    return (y2d.reshape(B, C, L), new_rv.reshape(1, L, 1, 1), new_buf, cur)


def mabn1d_eval_forward(x, weight, bias, running_var, *, eps=1e-5,
                        row_tile=None):
    """Eval-mode MABN1d forward: y = w * x / sqrt(running_var + eps) + b."""
    B, C, L = x.shape
    M = B * C
    g, Lp, Mp = _repack(M, L)
    x2d = x.reshape(Mp, Lp)
    rv = running_var.reshape(1, L).astype(jnp.float32)
    scale = weight.reshape(1, L).astype(jnp.float32) * lax.rsqrt(rv + eps)
    b2d = bias.reshape(1, L).astype(jnp.float32)
    scale_p = jnp.tile(scale, (1, g)) if g > 1 else scale
    bias_p = jnp.tile(b2d, (1, g)) if g > 1 else b2d
    vmem_limit = _vmem_limit_bytes()
    itemsize = x2d.dtype.itemsize
    if row_tile is not None:
        TMa = _clip_tile(row_tile, Mp)
    else:
        TMa = _clip_tile(int(0.7 * vmem_limit) //
                         max(1, Lp * (4 * itemsize + 8)), Mp)
    y2d = _apply_scale(x2d, scale_p, bias_p, TMa, vmem_limit)
    return y2d.reshape(B, C, L)


# ----------------------------------------------------------------------------
# Pure-JAX references mirroring the PyTorch code literally (for verification).
# ----------------------------------------------------------------------------
def mabn1d_train_reference(x, weight, bias, running_var, buffer_x2, iters,
                           *, eps=1e-5, momentum=0.98, warmup_iters=100):
    B, C, L = x.shape
    buffer_size = buffer_x2.shape[0]
    cur = int(iters) + 1
    xr = jnp.transpose(x, (0, 2, 1))[..., None]           # (B, L, C, 1)
    x2 = jnp.mean(xr * xr, axis=(3, 2, 0))                # (L,)
    buf = buffer_x2.at[cur % buffer_size].set(x2)
    if cur <= buffer_size or cur < warmup_iters:
        var = x2.reshape(1, L, 1, 1)
    else:
        var = buf.mean(axis=0).reshape(1, L, 1, 1)
    z = xr / jnp.sqrt(var + eps)
    r = jnp.sqrt(var + eps) / jnp.sqrt(running_var + eps)
    if cur <= max(1000, warmup_iters):
        r = jnp.clip(r, 1.0, 1.0)
    else:
        r = jnp.clip(r, 1.0 / 5.0, 5.0)
    y = r * z
    new_rv = momentum * running_var + (1 - momentum) * var
    y = weight.reshape(1, L, 1, 1) * y + bias.reshape(1, L, 1, 1)
    out = jnp.transpose(y[..., 0], (0, 2, 1))              # (B, C, L)
    return out, new_rv, buf, cur


def mabn1d_eval_reference(x, weight, bias, running_var, *, eps=1e-5):
    L = x.shape[-1]
    rv = running_var.reshape(1, 1, L)
    return (weight.reshape(1, 1, L) * (x / jnp.sqrt(rv + eps))
            + bias.reshape(1, 1, L))


def _check(a, b, name):
    a = np.asarray(a)
    b = np.asarray(b)
    if not np.allclose(a, b, rtol=1e-5, atol=1e-5):
        raise AssertionError(
            f"{name}: max abs err {np.max(np.abs(a - b))}")


if __name__ == "__main__":
    eps, momentum, warmup_iters = 1e-5, 0.98, 100
    rng = jax.random.PRNGKey(0)
    k1, k2, k3, k4, kp1, kp2 = jax.random.split(rng, 6)

    def make_params(key, L, buffer_size):
        kw, kb, kv, kx2 = jax.random.split(key, 4)
        weight = 1.0 + 0.1 * jax.random.normal(kw, (L,), jnp.float32)
        bias = 0.1 * jax.random.normal(kb, (L,), jnp.float32)
        running_var = 0.5 + jnp.abs(
            jax.random.normal(kv, (1, L, 1, 1), jnp.float32))
        buffer_x2 = jnp.abs(
            jax.random.normal(kx2, (buffer_size, L), jnp.float32))
        return weight, bias, running_var, buffer_x2

    def run_and_check(name, x, w, b, rv, buf, iters, **kw):
        y, new_rv, new_buf, _ = mabn1d_train_forward(
            x, w, b, rv, buf, iters, eps=eps, momentum=momentum,
            warmup_iters=warmup_iters, **kw)
        jax.block_until_ready(y)
        y_r, rv_r, buf_r, _ = mabn1d_train_reference(
            x, w, b, rv, buf, iters, eps=eps, momentum=momentum,
            warmup_iters=warmup_iters)
        _check(y, y_r, name + " y")
        _check(new_rv, rv_r, name + " running_var")
        _check(new_buf, buf_r, name + " buffer_x2")
        return new_rv, new_buf

    # Case 1: fused single-pass, lane-repacked (L=16 packed into 128 lanes),
    #         fresh module (warmup / var = x2 / r == 1 path).
    L, BUF = 16, 4
    w, b, rv0, buf0 = make_params(kp1, L, BUF)
    x1 = jax.random.normal(k1, (2, 4, L), jnp.float32)
    rv1, buf1 = run_and_check("case1(fused,warmup)", x1, w, b, rv0, buf0, 0)

    # Case 2: fused, large iteration count (buffer-mean var + r-clamp path).
    run_and_check("case2(fused,clamp)", x1, w, b, rv1, buf1, 5000)

    # Case 3: streaming two-pass with an XLA tail (packed rows = 20, tile 8).
    x3 = jax.random.normal(k2, (10, 16, L), jnp.float32)
    run_and_check("case3(stream,tail)", x3, w, b, rv1, buf1, 5000,
                  force_two_pass=True, row_tile=8)

    # Case 4: streaming two-pass with the 2-way core-parallel stats grid.
    x4 = jax.random.normal(k3, (32, 16, L), jnp.float32)
    run_and_check("case4(stream,2core)", x4, w, b, rv1, buf1, 5000,
                  force_two_pass=True, row_tile=8)

    # Case 5: fused path without lane repacking (L=24, 128 % L != 0).
    L5 = 24
    w5, b5, rv5, buf5 = make_params(kp2, L5, BUF)
    x5 = jax.random.normal(k4, (2, 4, L5), jnp.float32)
    run_and_check("case5(fused,norepack)", x5, w5, b5, rv5, buf5, 0)

    # Case 6: eval-mode forward.
    ye = mabn1d_eval_forward(x1, w, b, rv1, eps=eps)
    jax.block_until_ready(ye)
    _check(ye, mabn1d_eval_reference(x1, w, b, rv1, eps=eps), "case6(eval) y")

    print("KERNEL_OK")
</pallas_src>

<mosaic_0001>
module attributes {stable_mosaic.version = 11 : i64} {
  func.func @_mabn_fused_kernel(%arg0: memref<1x128xf32, #tpu.memory_space<vmem>>, %arg1: memref<1x16xf32, #tpu.memory_space<vmem>>, %arg2: memref<1x16xf32, #tpu.memory_space<vmem>>, %arg3: memref<1x16xf32, #tpu.memory_space<vmem>>, %arg4: memref<4x16xf32, #tpu.memory_space<vmem>>, %arg5: memref<4x1xf32, #tpu.memory_space<vmem>>, %arg6: memref<1x1xf32, #tpu.memory_space<vmem>>, %arg7: memref<1x1xf32, #tpu.memory_space<vmem>>, %arg8: memref<1x128xf32, #tpu.memory_space<vmem>>, %arg9: memref<1x16xf32, #tpu.memory_space<vmem>>, %arg10: memref<4x16xf32, #tpu.memory_space<vmem>>) attributes {dimension_semantics = [], scalar_prefetch = 0 : i64, scratch_operands = 0 : i64, tpu.core_type = #tpu.core_type<tc>} {
    %cst = arith.constant 0.000000e+00 : f32
    %0 = vector.broadcast %cst : f32 to vector<1x128xf32>
    %c0 = arith.constant 0 : index
    %c0_0 = arith.constant 0 : index
    %1 = vector.load %arg0[%c0, %c0_0] : memref<1x128xf32, #tpu.memory_space<vmem>>, vector<1x128xf32>
    %2 = arith.mulf %1, %1 : vector<1x128xf32>
    %cst_1 = arith.constant dense<0.000000e+00> : vector<128xf32>
    %3 = vector.multi_reduction <add>, %2, %cst_1 [0] : vector<1x128xf32> to vector<128xf32>
    %4 = vector.shape_cast %3 : vector<128xf32> to vector<1x128xf32>
    %5 = arith.addf %0, %4 : vector<1x128xf32>
    %6 = vector.extract_strided_slice %5 {offsets = [0, 0], sizes = [1, 16], strides = [1, 1]} : vector<1x128xf32> to vector<1x16xf32>
    %7 = vector.extract_strided_slice %5 {offsets = [0, 16], sizes = [1, 16], strides = [1, 1]} : vector<1x128xf32> to vector<1x16xf32>
    %8 = arith.addf %6, %7 : vector<1x16xf32>
    %9 = vector.extract_strided_slice %5 {offsets = [0, 32], sizes = [1, 16], strides = [1, 1]} : vector<1x128xf32> to vector<1x16xf32>
    %10 = arith.addf %8, %9 : vector<1x16xf32>
    %11 = vector.extract_strided_slice %5 {offsets = [0, 48], sizes = [1, 16], strides = [1, 1]} : vector<1x128xf32> to vector<1x16xf32>
    %12 = arith.addf %10, %11 : vector<1x16xf32>
    %13 = vector.extract_strided_slice %5 {offsets = [0, 64], sizes = [1, 16], strides = [1, 1]} : vector<1x128xf32> to vector<1x16xf32>
    %14 = arith.addf %12, %13 : vector<1x16xf32>
    %15 = vector.extract_strided_slice %5 {offsets = [0, 80], sizes = [1, 16], strides = [1, 1]} : vector<1x128xf32> to vector<1x16xf32>
    %16 = arith.addf %14, %15 : vector<1x16xf32>
    %17 = vector.extract_strided_slice %5 {offsets = [0, 96], sizes = [1, 16], strides = [1, 1]} : vector<1x128xf32> to vector<1x16xf32>
    %18 = arith.addf %16, %17 : vector<1x16xf32>
    %19 = vector.extract_strided_slice %5 {offsets = [0, 112], sizes = [1, 16], strides = [1, 1]} : vector<1x128xf32> to vector<1x16xf32>
    %20 = arith.addf %18, %19 : vector<1x16xf32>
    %cst_2 = arith.constant 1.250000e-01 : f32
    %21 = vector.broadcast %cst_2 : f32 to vector<1x16xf32>
    %22 = arith.mulf %20, %21 : vector<1x16xf32>
    %c0_3 = arith.constant 0 : index
    %c0_4 = arith.constant 0 : index
    %23 = vector.load %arg4[%c0_3, %c0_4] : memref<4x16xf32, #tpu.memory_space<vmem>>, vector<4x16xf32>
    %c0_5 = arith.constant 0 : index
    %c0_6 = arith.constant 0 : index
    %24 = vector.load %arg5[%c0_5, %c0_6] : memref<4x1xf32, #tpu.memory_space<vmem>>, vector<4x1xf32>
    %25 = vector.broadcast %24 : vector<4x1xf32> to vector<4x16xf32>
    %26 = vector.broadcast %22 : vector<1x16xf32> to vector<4x16xf32>
    %27 = arith.mulf %25, %26 : vector<4x16xf32>
    %cst_7 = arith.constant 1.000000e+00 : f32
    %28 = vector.broadcast %cst_7 : f32 to vector<4x1xf32>
    %29 = arith.subf %28, %24 : vector<4x1xf32>
    %30 = vector.broadcast %29 : vector<4x1xf32> to vector<4x16xf32>
    %31 = arith.mulf %30, %23 : vector<4x16xf32>
    %32 = arith.addf %27, %31 : vector<4x16xf32>
    %c0_8 = arith.constant 0 : index
    %c0_9 = arith.constant 0 : index
    %33 = vector.load %arg6[%c0_8, %c0_9] : memref<1x1xf32, #tpu.memory_space<vmem>>, vector<1x1xf32>
    %34 = vector.broadcast %33 : vector<1x1xf32> to vector<1x16xf32>
    %35 = arith.mulf %34, %22 : vector<1x16xf32>
    %cst_10 = arith.constant 1.000000e+00 : f32
    %36 = vector.broadcast %cst_10 : f32 to vector<1x1xf32>
    %37 = arith.subf %36, %33 : vector<1x1xf32>
    %cst_11 = arith.constant dense<0.000000e+00> : vector<16xf32>
    %38 = vector.multi_reduction <add>, %32, %cst_11 [0] : vector<4x16xf32> to vector<16xf32>
    %39 = vector.shape_cast %38 : vector<16xf32> to vector<1x16xf32>
    %cst_12 = arith.constant 4.000000e+00 : f32
    %40 = vector.broadcast %cst_12 : f32 to vector<1x16xf32>
    %41 = arith.divf %39, %40 : vector<1x16xf32>
    %42 = vector.broadcast %37 : vector<1x1xf32> to vector<1x16xf32>
    %43 = arith.mulf %42, %41 : vector<1x16xf32>
    %44 = arith.addf %35, %43 : vector<1x16xf32>
    %c0_13 = arith.constant 0 : index
    %c0_14 = arith.constant 0 : index
    %45 = vector.load %arg3[%c0_13, %c0_14] : memref<1x16xf32, #tpu.memory_space<vmem>>, vector<1x16xf32>
    %cst_15 = arith.constant 9.99999974E-6 : f32
    %46 = vector.broadcast %cst_15 : f32 to vector<1x16xf32>
    %47 = arith.addf %44, %46 : vector<1x16xf32>
    %48 = math.rsqrt %47 : vector<1x16xf32>
    %cst_16 = arith.constant 9.99999974E-6 : f32
    %49 = vector.broadcast %cst_16 : f32 to vector<1x16xf32>
    %50 = arith.addf %44, %49 : vector<1x16xf32>
    %51 = math.sqrt %50 : vector<1x16xf32>
    %cst_17 = arith.constant 9.99999974E-6 : f32
    %52 = vector.broadcast %cst_17 : f32 to vector<1x16xf32>
    %53 = arith.addf %45, %52 : vector<1x16xf32>
    %54 = math.rsqrt %53 : vector<1x16xf32>
    %55 = arith.mulf %51, %54 : vector<1x16xf32>
    %c0_18 = arith.constant 0 : index
    %c0_19 = arith.constant 0 : index
    %56 = vector.load %arg7[%c0_18, %c0_19] : memref<1x1xf32, #tpu.memory_space<vmem>>, vector<1x1xf32>
    %cst_20 = arith.constant 1.000000e+00 : f32
    %57 = vector.broadcast %cst_20 : f32 to vector<1x1xf32>
    %58 = arith.subf %57, %56 : vector<1x1xf32>
    %cst_21 = arith.constant 2.000000e-01 : f32
    %cst_22 = arith.constant 5.000000e+00 : f32
    %59 = vector.broadcast %cst_21 : f32 to vector<1x16xf32>
    %60 = arith.maximumf %59, %55 : vector<1x16xf32>
    %61 = vector.broadcast %cst_22 : f32 to vector<1x16xf32>
    %62 = arith.minimumf %61, %60 : vector<1x16xf32>
    %63 = vector.broadcast %58 : vector<1x1xf32> to vector<1x16xf32>
    %64 = arith.mulf %63, %62 : vector<1x16xf32>
    %65 = vector.broadcast %56 : vector<1x1xf32> to vector<1x16xf32>
    %66 = arith.addf %65, %64 : vector<1x16xf32>
    %c0_23 = arith.constant 0 : index
    %c0_24 = arith.constant 0 : index
    %67 = vector.load %arg1[%c0_23, %c0_24] : memref<1x16xf32, #tpu.memory_space<vmem>>, vector<1x16xf32>
    %68 = arith.mulf %67, %66 : vector<1x16xf32>
    %69 = arith.mulf %68, %48 : vector<1x16xf32>
    %c0_25 = arith.constant 0 : index
    %c0_26 = arith.constant 0 : index
    %70 = vector.load %arg2[%c0_25, %c0_26] : memref<1x16xf32, #tpu.memory_space<vmem>>, vector<1x16xf32>
    %cst_27 = arith.constant 9.800000e-01 : f32
    %71 = vector.broadcast %cst_27 : f32 to vector<1x16xf32>
    %72 = arith.mulf %71, %45 : vector<1x16xf32>
    %cst_28 = arith.constant 2.000000e-02 : f32
    %73 = vector.broadcast %cst_28 : f32 to vector<1x16xf32>
    %74 = arith.mulf %73, %44 : vector<1x16xf32>
    %75 = arith.addf %72, %74 : vector<1x16xf32>
    %c0_29 = arith.constant 0 : index
    %c0_30 = arith.constant 0 : index
    %76 = vector.load %arg9[%c0_29, %c0_30] : memref<1x16xf32, #tpu.memory_space<vmem>>, vector<1x16xf32>
    tpu.vector_store %arg9[%c0_29, %c0_30], %75 {strides = array<i32>} : memref<1x16xf32, #tpu.memory_space<vmem>>, vector<1x16xf32>,
    %c0_31 = arith.constant 0 : index
    %c0_32 = arith.constant 0 : index
    %77 = vector.load %arg10[%c0_31, %c0_32] : memref<4x16xf32, #tpu.memory_space<vmem>>, vector<4x16xf32>
    tpu.vector_store %arg10[%c0_31, %c0_32], %32 {strides = array<i32>} : memref<4x16xf32, #tpu.memory_space<vmem>>, vector<4x16xf32>,
    %78 = tpu.concatenate %69, %69, %69, %69, %69, %69, %69, %69 in 1 : vector<1x16xf32>, vector<1x16xf32>, vector<1x16xf32>, vector<1x16xf32>, vector<1x16xf32>, vector<1x16xf32>, vector<1x16xf32>, vector<1x16xf32> -> vector<1x128xf32>
    %79 = tpu.concatenate %70, %70, %70, %70, %70, %70, %70, %70 in 1 : vector<1x16xf32>, vector<1x16xf32>, vector<1x16xf32>, vector<1x16xf32>, vector<1x16xf32>, vector<1x16xf32>, vector<1x16xf32>, vector<1x16xf32> -> vector<1x128xf32>
    %c0_33 = arith.constant 0 : index
    %c0_34 = arith.constant 0 : index
    %80 = vector.load %arg0[%c0_33, %c0_34] : memref<1x128xf32, #tpu.memory_space<vmem>>, vector<1x128xf32>
    %81 = arith.mulf %78, %80 : vector<1x128xf32>
    %82 = arith.addf %81, %79 : vector<1x128xf32>
    %c0_35 = arith.constant 0 : index
    %c0_36 = arith.constant 0 : index
    %83 = vector.load %arg8[%c0_35, %c0_36] : memref<1x128xf32, #tpu.memory_space<vmem>>, vector<1x128xf32>
    tpu.vector_store %arg8[%c0_35, %c0_36], %82 {strides = array<i32>} : memref<1x128xf32, #tpu.memory_space<vmem>>, vector<1x128xf32>,
    return
  }
}

</mosaic_0001>

<llo_original>
// kernel: tpu_custom_call.1
$region0: #{tpu_custom_call.1}
  #allocation0 [shape = 'u32[]', space=smem, size = 0x4, offset = 0x4, fixed_abs, tag = 'smem constant byte address 0x4 - core index']
  #allocation1 [shape = 'u32[144,128]{1,0:T(1,128)}', space=vmem, size = 0x12000, scoped, tag = 'internal scratch']
  #allocation2 [shape = 'f32[1,1]{1,0:T(1,128)S(1)}', space=vmem, size = 0x200, scoped, tag = 'scoped memory for tpu_custom_call.1']
  #allocation3 [shape = 'f32[1,1]{1,0:T(1,128)S(1)}', space=vmem, size = 0x200, scoped, tag = 'scoped memory for tpu_custom_call.1']
  %s0 = inlined_call_operand.vmem [shape: f32[1,128], index: 0, kind: input, shape index: {}]
  %s1 = inlined_call_operand.vmem [shape: f32[1,16], index: 1, kind: input, shape index: {}]
  %s2 = inlined_call_operand.vmem [shape: f32[1,16], index: 2, kind: input, shape index: {}]
  %s3 = inlined_call_operand.vmem [shape: f32[1,16], index: 3, kind: input, shape index: {}]
  %s4 = inlined_call_operand.vmem [shape: f32[4,16], index: 4, kind: input, shape index: {}]
  %s5 = inlined_call_operand.vmem [shape: f32[4,1], index: 5, kind: input, shape index: {}]
  %s6 = inlined_call_operand.<no memory space> [shape: f32[1,1], index: 6, kind: input, shape index: {}]
  %s7 = inlined_call_operand.<no memory space> [shape: f32[1,1], index: 7, kind: input, shape index: {}]
  %s8 = inlined_call_operand.hbm [shape: f32[1,128], index: 8, kind: output, shape index: {0}]
  %s9 = inlined_call_operand.hbm [shape: f32[1,16], index: 9, kind: output, shape index: {1}]
  %s10 = inlined_call_operand.hbm [shape: f32[4,16], index: 10, kind: output, shape index: {2}]
  %11 = xla_tuple %s8, %s9, %s10
  %s12 = sld [smem:[#allocation0]]
  $region58: #{tpu_custom_call.1} parent=0
    _
  %s14 = ssub.s32 1, %s12
  %s15 = scalar_select 0, %s14, %s12
  %v16 = vstv %s6
  %17 = vst [vmem:[#allocation2] sm:$0x1] %v16
  %v18 = vstv %s7
  %19 = vst [vmem:[#allocation3] sm:$0x1] %v18
  $region1: #{tpu_custom_call.1} parent=0
    #allocation4 [shape = 'u8[512]{0}', space=vmem, size = 0x400, scoped, tag = 'output window, operand 0, single buffered']
    #allocation5 [shape = 's32[1]{0}', space=sflag, size = 0x4, scoped, tag = 'scoped memory for tpu_custom_call.1']
    #allocation6 [shape = 'u8[512]{0}', space=vmem, size = 0x400, scoped, tag = 'output window, operand 1, single buffered']
    #allocation7 [shape = 's32[1]{0}', space=sflag, size = 0x4, scoped, tag = 'scoped memory for tpu_custom_call.1']
    #allocation8 [shape = 'u8[2048]{0}', space=vmem, size = 0x800, scoped, tag = 'output window, operand 2, single buffered']
    %20 = vsyncpa [#allocation5], 0
    %21 = vsyncpa [#allocation7], 0
    // Predicated region
    $region2: #{tpu_custom_call.1} parent=1 // pred_check
      _
    $region3: #{tpu_custom_call.1} parent=1 // pred_check_branch
      %23 = sbr.rel (0) target = $region5
    $region4: #{tpu_custom_call.1} parent=1 // pred_region
      _
    $region5: #{tpu_custom_call.1} parent=1 // pred_fallthru
      _
    // Predicated region
    $region6: #{tpu_custom_call.1} parent=1 // pred_check
      _
    $region7: #{tpu_custom_call.1} parent=1 // pred_check_branch
      %25 = sbr.rel (0) target = $region9
    $region8: #{tpu_custom_call.1} parent=1 // pred_region
      _
    $region9: #{tpu_custom_call.1} parent=1 // pred_fallthru
      _
    // Predicated region
    $region10: #{tpu_custom_call.1} parent=1 // pred_check
      _
    $region11: #{tpu_custom_call.1} parent=1 // pred_check_branch
      %27 = sbr.rel (0) target = $region13
    $region12: #{tpu_custom_call.1} parent=1 // pred_region
      _
    $region13: #{tpu_custom_call.1} parent=1 // pred_fallthru
      _
    // Predicated region
    $region14: #{tpu_custom_call.1} parent=1 // pred_check
      _
    $region15: #{tpu_custom_call.1} parent=1 // pred_check_branch
      %29 = sbr.rel (0) target = $region17
    $region16: #{tpu_custom_call.1} parent=1 // pred_region
      _
    $region17: #{tpu_custom_call.1} parent=1 // pred_fallthru
      _
    // Predicated region
    $region18: #{tpu_custom_call.1} parent=1 // pred_check
      _
    $region19: #{tpu_custom_call.1} parent=1 // pred_check_branch
      %31 = sbr.rel (0) target = $region21
    $region20: #{tpu_custom_call.1} parent=1 // pred_region
      _
    $region21: #{tpu_custom_call.1} parent=1 // pred_fallthru
      _
    // Predicated region
    $region22: #{tpu_custom_call.1} parent=1 // pred_check
      _
    $region23: #{tpu_custom_call.1} parent=1 // pred_check_branch
      %33 = sbr.rel (0) target = $region25
    $region24: #{tpu_custom_call.1} parent=1 // pred_region
      _
    $region25: #{tpu_custom_call.1} parent=1 // pred_fallthru
      _
    // Predicated region
    $region26: #{tpu_custom_call.1} parent=1 // pred_check
      _
    $region27: #{tpu_custom_call.1} parent=1 // pred_check_branch
      %35 = sbr.rel (0) target = $region29
    $region28: #{tpu_custom_call.1} parent=1 // pred_region
      _
    $region29: #{tpu_custom_call.1} parent=1 // pred_fallthru
      _
    // Predicated region
    $region30: #{tpu_custom_call.1} parent=1 // pred_check
      _
    $region31: #{tpu_custom_call.1} parent=1 // pred_check_branch
      %37 = sbr.rel (0) target = $region33
    $region32: #{tpu_custom_call.1} parent=1 // pred_region
      _
    $region33: #{tpu_custom_call.1} parent=1 // pred_fallthru
      _
    %v38 = vld [vmem:[%s0] sm:$0x1]
    %v39 = vmul.f32 %v38, %v38
    %v40 = vadd.f32 %v39, 0.0
    %v41 = vadd.f32 %v40, 0.0
    %43 = vrot.lane.b32.xlu0 %v41, 112
    %v44 = vpop.permute.xlu0 %43
    %v46 = vadd.f32 %v41, %v44
    %47 = vrot.lane.b32.xlu0 %v41, 96
    %v48 = vpop.permute.xlu0 %47
    %v50 = vadd.f32 %v46, %v48
    %51 = vrot.lane.b32.xlu0 %v41, 80
    %v52 = vpop.permute.xlu0 %51
    %v54 = vadd.f32 %v50, %v52
    %55 = vrot.lane.b32.xlu0 %v41, 64
    %v56 = vpop.permute.xlu0 %55
    %v58 = vadd.f32 %v54, %v56
    %59 = vrot.lane.b32.xlu0 %v41, 48
    %v60 = vpop.permute.xlu0 %59
    %v62 = vadd.f32 %v58, %v60
    %63 = vrot.lane.b32.xlu0 %v41, 32
    %v64 = vpop.permute.xlu0 %63
    %v66 = vadd.f32 %v62, %v64
    %67 = vrot.lane.b32.xlu0 %v41, 16
    %v68 = vpop.permute.xlu0 %67
    %v70 = vadd.f32 %v66, %v68
    %v71 = vmul.f32 %v70, 0.125
    %v72 = vld [vmem:[%s4] sm:$0xf]
    %v73 = vld [vmem:[%s5] sm:$0xf]
    %75 = vset.pattern.permute.xlu0 0
    %76 = vperm.xlu0 %75, %v73
    %v77 = vpop.permute.xlu0 %76
    %v80 = vlaneseq
    %v81 = vshrl.u32 %v80, 7
    %v82 = vsub.s32 0, %v81
    %v83 = vrot.slane %v71, %v82
    %v85 = vmul.f32 %v77, %v83
    %v86 = vsub.f32 1.0, %v73
    %88 = vset.pattern.permute.xlu0 0
    %89 = vperm.xlu0 %88, %v86
    %v90 = vpop.permute.xlu0 %89
    %v92 = vmul.f32 %v90, %v72
    %v93 = vadd.f32 %v85, %v92
    %v94 = vld [vmem:[#allocation2] sm:$0x1]
    %96 = vset.pattern.permute.xlu0 0
    %97 = vperm.xlu0 %96, %v94
    %v98 = vpop.permute.xlu0 %97
    %v100 = vlaneseq
    %v101 = vshrl.u32 %v100, 7
    %v102 = vsub.s32 0, %v101
    %v103 = vrot.slane %v98, %v102
    %v104 = vmul.f32 %v103, %v71
    %v105 = vsub.f32 1.0, %v94
    %vm106 = vcmask 125952
    %v107 = vsel %vm106, %v93, 0.0
    %v108 = vrot.slane %v107, 4
    %v109 = vadd.f32 %v107, %v108
    %v110 = vrot.slane %v109, 2
    %v111 = vadd.f32 %v109, %v110
    %v112 = vrot.slane %v111, 1
    %v113 = vadd.f32 %v111, %v112
    %v114 = vrcp.pop 4.0
    %v115 = vmul.f32 %v113, %v114
    %117 = vset.pattern.permute.xlu0 0
    %118 = vperm.xlu0 %117, %v105
    %v119 = vpop.permute.xlu0 %118
    %v121 = vlaneseq
    %v122 = vshrl.u32 %v121, 7
    %v123 = vsub.s32 0, %v122
    %v124 = vrot.slane %v119, %v123
    %v125 = vmul.f32 %v124, %v115
    %v126 = vadd.f32 %v104, %v125
    %v127 = vld [vmem:[%s3] sm:$0x1]
    %v128 = vadd.f32 %v126, 1e-05
    %v129 = vrsqrt.pop %v128
    %v130 = vrsqrt.pop %v128
    %v131 = vmul.f32 %v128, %v130
    %vm132 = vcmp.eq.f32.partialorder %v128, inf
    %v133 = vsel %vm132, %v128, %v131
    %vm134 = vcmp.eq.f32.partialorder %v128, 0.0
    %v135 = vand.u32 %v128, 2147483648
    %v136 = vsel %vm134, %v135, %v133
    %v137 = vadd.f32 %v127, 1e-05
    %v138 = vrsqrt.pop %v137
    %v139 = vmul.f32 %v136, %v138
    %v140 = vld [vmem:[#allocation3] sm:$0x1]
    %v141 = vsub.f32 1.0, %v140
    %v142 = vmax.f32 %v139, 0.2
    %v143 = vmin.f32 %v142, 5.0
    %145 = vset.pattern.permute.xlu0 0
    %146 = vperm.xlu0 %145, %v141
    %v147 = vpop.permute.xlu0 %146
    %v149 = vlaneseq
    %v150 = vshrl.u32 %v149, 7
    %v151 = vsub.s32 0, %v150
    %v152 = vrot.slane %v147, %v151
    %v153 = vmul.f32 %v152, %v143
    %155 = vset.pattern.permute.xlu0 0
    %156 = vperm.xlu0 %155, %v140
    %v157 = vpop.permute.xlu0 %156
    %v159 = vlaneseq
    %v160 = vshrl.u32 %v159, 7
    %v161 = vsub.s32 0, %v160
    %v162 = vrot.slane %v157, %v161
    %v163 = vadd.f32 %v162, %v153
    %v164 = vld [vmem:[%s1] sm:$0x1]
    %v165 = vmul.f32 %v164, %v163
    %v166 = vmul.f32 %v165, %v129
    %v167 = vld [vmem:[%s2] sm:$0x1]
    %v168 = vmul.f32 %v127, 0.98
    %v169 = vmul.f32 %v126, 0.02
    %v170 = vadd.f32 %v168, %v169
    %vm171 = vcmask 122880
    %172 = vst.msk [vmem:[#allocation6] sm:$0x1] %vm171, %v170
    %173 = vst.msk [vmem:[#allocation8] sm:$0xf] %vm106, %v93
    %v175 = vlaneseq
    %v176 = vshrl.u32 %v175, 7
    %v177 = vsub.s32 0, %v176
    %v178 = vrot.slane %v166, %v177
    %179 = vrot.lane.b32.xlu0 %v178, 16
    %v180 = vpop.permute.xlu0 %179
    %182 = vrot.lane.b32.xlu0 %v178, 32
    %v183 = vpop.permute.xlu0 %182
    %185 = vrot.lane.b32.xlu0 %v178, 48
    %v186 = vpop.permute.xlu0 %185
    %188 = vrot.lane.b32.xlu0 %v178, 64
    %v189 = vpop.permute.xlu0 %188
    %191 = vrot.lane.b32.xlu0 %v178, 80
    %v192 = vpop.permute.xlu0 %191
    %194 = vrot.lane.b32.xlu0 %v178, 96
    %v195 = vpop.permute.xlu0 %194
    %197 = vrot.lane.b32.xlu0 %v178, 112
    %v198 = vpop.permute.xlu0 %197
    %vm200 = vcmask 130048
    %v201 = vsel %vm200, %v166, %v180
    %vm202 = vcmask 261120
    %v203 = vsel %vm202, %v201, %v183
    %vm204 = vcmask 392192
    %v205 = vsel %vm204, %v203, %v186
    %vm206 = vcmask 523264
    %v207 = vsel %vm206, %v205, %v189
    %vm208 = vcmask 654336
    %v209 = vsel %vm208, %v207, %v192
    %vm210 = vcmask 785408
    %v211 = vsel %vm210, %v209, %v195
    %vm212 = vcmask 916480
    %v213 = vsel %vm212, %v211, %v198
    %v215 = vlaneseq
    %v216 = vshrl.u32 %v215, 7
    %v217 = vsub.s32 0, %v216
    %v218 = vrot.slane %v167, %v217
    %219 = vrot.lane.b32.xlu0 %v218, 16
    %v220 = vpop.permute.xlu0 %219
    %222 = vrot.lane.b32.xlu0 %v218, 32
    %v223 = vpop.permute.xlu0 %222
    %225 = vrot.lane.b32.xlu0 %v218, 48
    %v226 = vpop.permute.xlu0 %225
    %228 = vrot.lane.b32.xlu0 %v218, 64
    %v229 = vpop.permute.xlu0 %228
    %231 = vrot.lane.b32.xlu0 %v218, 80
    %v232 = vpop.permute.xlu0 %231
    %234 = vrot.lane.b32.xlu0 %v218, 96
    %v235 = vpop.permute.xlu0 %234
    %237 = vrot.lane.b32.xlu0 %v218, 112
    %v238 = vpop.permute.xlu0 %237
    %v240 = vsel %vm200, %v167, %v220
    %v241 = vsel %vm202, %v240, %v223
    %v242 = vsel %vm204, %v241, %v226
    %v243 = vsel %vm206, %v242, %v229
    %v244 = vsel %vm208, %v243, %v232
    %v245 = vsel %vm210, %v244, %v235
    %v246 = vsel %vm212, %v245, %v238
    %v247 = vld [vmem:[%s0] sm:$0x1]
    %v248 = vmul.f32 %v213, %v247
    %v249 = vadd.f32 %v248, %v246
    %250 = vst [vmem:[#allocation4] sm:$0x1] %v249
    // Predicated region
    $region34: #{tpu_custom_call.1} parent=1 // pred_check
      _
    $region35: #{tpu_custom_call.1} parent=1 // pred_check_branch
      %252 = sbr.rel (0) target = $region37
    $region36: #{tpu_custom_call.1} parent=1 // pred_region
      %s254 = ssub.s32 16, 16
      %255 = vsyncadd [#allocation5], %s254
      %s257 = sshll.u32 [#allocation4], 4
      %s258 = int_to_ptr.vmem [resolvable:$true] %s257
      %260 = dma.vmem_to_hbm [thread:$0]  %s258, 16, %s8, [#allocation5]
    $region37: #{tpu_custom_call.1} parent=1 // pred_fallthru
      _
    // Predicated region
    $region38: #{tpu_custom_call.1} parent=1 // pred_check
      _
    $region39: #{tpu_custom_call.1} parent=1 // pred_check_branch
      %262 = sbr.rel (0) target = $region41
    $region40: #{tpu_custom_call.1} parent=1 // pred_region
      %s264 = ssub.s32 16, 16
      %265 = vsyncadd [#allocation7], %s264
      %s267 = sshll.u32 [#allocation6], 4
      %s268 = int_to_ptr.vmem [resolvable:$true] %s267
      %270 = dma.vmem_to_hbm [thread:$0]  %s268, 16, %s9, [#allocation7]
    $region41: #{tpu_custom_call.1} parent=1 // pred_fallthru
      _
    // Predicated region
    $region42: #{tpu_custom_call.1} parent=1 // pred_check
      _
    $region43: #{tpu_custom_call.1} parent=1 // pred_check_branch
      %272 = sbr.rel (0) target = $region45
    $region44: #{tpu_custom_call.1} parent=1 // pred_region
      %s274 = ssub.s32 64, 64
      %275 = vsyncadd [#allocation7], %s274
      %s277 = sshll.u32 [#allocation8], 4
      %s278 = int_to_ptr.vmem [resolvable:$true] %s277
      %280 = dma.vmem_to_hbm [thread:$0]  %s278, 64, %s10, [#allocation7]
    $region45: #{tpu_custom_call.1} parent=1 // pred_fallthru
      _
    // Predicated region
    $region46: #{tpu_custom_call.1} parent=1 // pred_check
      _
    $region47: #{tpu_custom_call.1} parent=1 // pred_check_branch
      %282 = sbr.rel (0) target = $region49
    $region48: #{tpu_custom_call.1} parent=1 // pred_region
      %283 = dma.done [#allocation5], 16
    $region49: #{tpu_custom_call.1} parent=1 // pred_fallthru
      _
    // Predicated region
    $region50: #{tpu_custom_call.1} parent=1 // pred_check
      _
    $region51: #{tpu_custom_call.1} parent=1 // pred_check_branch
      %285 = sbr.rel (0) target = $region53
    $region52: #{tpu_custom_call.1} parent=1 // pred_region
      %286 = dma.done [#allocation7], 16
    $region53: #{tpu_custom_call.1} parent=1 // pred_fallthru
      _
    // Predicated region
    $region54: #{tpu_custom_call.1} parent=1 // pred_check
      _
    $region55: #{tpu_custom_call.1} parent=1 // pred_check_branch
      %288 = sbr.rel (0) target = $region57
    $region56: #{tpu_custom_call.1} parent=1 // pred_region
      %289 = dma.done [#allocation7], 64
    $region57: #{tpu_custom_call.1} parent=1 // pred_fallthru
      _
    %290 = vsyncpa [#allocation5], 1
    %291 = vsyncpa [#allocation7], 1

</llo_original>
